<compile_context>
chip_gen: v5e
topology: v5e:2x2
jax: 0.10.0
libtpu: 0.0.40
codegen_flags: <defaults>
</compile_context>

<pallas_src>
import jax
import jax.numpy as jnp
import numpy as np
from jax.experimental import pallas as pl
from jax.experimental.pallas import tpu as pltpu


def _cdiv(a, b):
    return -(-a // b)


def _round_up(a, b):
    return _cdiv(a, b) * b


def _vmem_budget():
    """(block_buffer_budget, vmem_limit_bytes, min_grid_steps, want_even_grid)."""
    cap = None
    kind = ""
    try:
        cap = getattr(pltpu.get_tpu_info(), "vmem_capacity_bytes", None)
    except Exception:
        cap = None
    try:
        kind = jax.devices()[0].device_kind.lower()
    except Exception:
        kind = ""
    small_vmem = ("v7" in kind) or ("7x" in kind)
    if cap is not None and cap < 96 * 1024 * 1024:
        small_vmem = True
    if small_vmem:
        # v7x-class: 64 MiB VMEM per TensorCore, 2 TCs per chip.
        return 24 << 20, 48 << 20, 4, True
    # v5e / v6e: 128 MiB VMEM, single TensorCore.
    return 44 << 20, 96 << 20, 2, False


def _choose_tile_rows(ns, row_bytes):
    """Rows per grid step (multiple of 8) + vmem limit, per TPU generation.

    row_bytes is exact (no hidden padding): the (NS, C*HW_p) layout already has
    the lane dim a multiple of 128 and the sublane dim a multiple of 8.
    """
    budget, vmem_limit, min_steps, want_even = _vmem_budget()
    ns8 = _round_up(max(ns, 1), 8)
    # 3 pipelined arrays (sil, par, out) x double buffering = 6 block buffers.
    max_tb = max(8, (budget // (6 * row_bytes)) // 8 * 8)
    # Fewest steps that respect the VMEM budget, but keep >= min_steps so DMA
    # overlaps compute (and both v7x TensorCores get work).  No NS//4 cap.
    steps = max(min_steps, _cdiv(ns8, max_tb))
    if want_even and steps > 1 and steps % 2:
        steps += 1
    steps = max(1, min(steps, ns8 // 8))      # at least 8 rows per step
    tb = _round_up(_cdiv(ns8, steps), 8)
    return tb, vmem_limit


def _make_ca_kernel(C, HW, HW_p):
    inv_hw = 1.0 / float(HW)

    def kernel(sil_ref, par_ref, w1t_ref, w2t_ref, out_ref, pooled_ref):
        # sil_ref / par_ref / out_ref : (tb, C*HW_p)   lane- and sublane-dense
        # w1t_ref : (2C, hid)   fc1 weight, pre-transposed (resident in VMEM)
        # w2t_ref : (hid, 2C)   fc2 weight, pre-transposed (resident in VMEM)
        # pooled_ref : (tb, 2C) VMEM scratch for the pooled descriptor.

        # --- AdaptiveAvgPool2d(1): per-channel mean over H*W (lane reduce). ---
        # Work on ref slices so the big block is never bound as one value.
        for c in range(C):
            sl = slice(c * HW_p, (c + 1) * HW_p)
            pooled_ref[:, c:c + 1] = (
                jnp.sum(sil_ref[:, sl], axis=-1, keepdims=True) * inv_hw)
            pooled_ref[:, C + c:C + c + 1] = (
                jnp.sum(par_ref[:, sl], axis=-1, keepdims=True) * inv_hw)

        pooled = pooled_ref[...]                                  # (tb, 2C)

        # --- fc1 (+ReLU): single (2C, hid) dot on the concatenated vector. ---
        hidden = jnp.maximum(
            jnp.dot(pooled, w1t_ref[...], preferred_element_type=jnp.float32),
            0.0)                                                  # (tb, hid)

        # --- fc2 (+Sigmoid): single (hid, 2C) dot; slice into halves below. --
        att = jax.nn.sigmoid(
            jnp.dot(hidden, w2t_ref[...], preferred_element_type=jnp.float32))

        # --- Channel-wise scale of both halves + sum (== chunk + add). -------
        for c in range(C):
            sl = slice(c * HW_p, (c + 1) * HW_p)
            out_ref[:, sl] = (sil_ref[:, sl] * att[:, c:c + 1]
                              + par_ref[:, sl] * att[:, C + c:C + c + 1])

    return kernel


def ca_layers_forward(sil_feat, par_feat, w1, w2):
    """sil_feat, par_feat: (N, C, S, H, W) f32.  w1: (hid, 2C), w2: (2C, hid)."""
    N, C, S, H, W = sil_feat.shape
    NS, HW = N * S, H * W
    hid = w1.shape[0]

    # torch `.contiguous().view(N*S, C, H, W)` is a row-major reinterpretation,
    # identical to jnp.reshape; flattening (C, H, W) onto the lane axis is
    # another free reshape (no transposes anywhere).
    sil3 = sil_feat.reshape(NS, C, HW).astype(jnp.float32)
    par3 = par_feat.reshape(NS, C, HW).astype(jnp.float32)

    # Lane-dense insurance: pad H*W up to a multiple of 128 (no-op for 16x16).
    HW_p = _round_up(HW, 128)
    if HW_p != HW:
        pad = ((0, 0), (0, 0), (0, HW_p - HW))
        sil3 = jnp.pad(sil3, pad)
        par3 = jnp.pad(par3, pad)
    L = C * HW_p
    sil2 = sil3.reshape(NS, L)
    par2 = par3.reshape(NS, L)

    # Generation-aware tile size (rows per grid step, multiple of 8).
    row_bytes = L * jnp.dtype(jnp.float32).itemsize
    tb, vmem_limit = _choose_tile_rows(NS, row_bytes)

    # Pad NS up to a whole number of blocks instead of shrinking the tile
    # (padded rows are zeros; their outputs are sliced off below).
    NS_p = _round_up(NS, tb)
    if NS_p != NS:
        sil2 = jnp.pad(sil2, ((0, NS_p - NS), (0, 0)))
        par2 = jnp.pad(par2, ((0, NS_p - NS), (0, 0)))

    # Pre-transpose the fc weights once so the kernel does plain dots.
    w1t = jnp.asarray(w1, jnp.float32).T          # (2C, hid)
    w2t = jnp.asarray(w2, jnp.float32).T          # (hid, 2C)

    grid = (NS_p // tb,)
    out = pl.pallas_call(
        _make_ca_kernel(C, HW, HW_p),
        out_shape=jax.ShapeDtypeStruct((NS_p, L), jnp.float32),
        grid_spec=pltpu.PrefetchScalarGridSpec(
            num_scalar_prefetch=0,
            grid=grid,
            in_specs=[
                pl.BlockSpec((tb, L), lambda i: (i, 0)),
                pl.BlockSpec((tb, L), lambda i: (i, 0)),
                pl.BlockSpec((2 * C, hid), lambda i: (0, 0)),   # weights resident
                pl.BlockSpec((hid, 2 * C), lambda i: (0, 0)),
            ],
            out_specs=pl.BlockSpec((tb, L), lambda i: (i, 0)),
            scratch_shapes=[pltpu.VMEM((tb, 2 * C), jnp.float32)],
        ),
        compiler_params=pltpu.CompilerParams(
            dimension_semantics=("parallel",),
            vmem_limit_bytes=vmem_limit,
        ),
    )(sil2, par2, w1t, w2t)

    out = out[:NS]
    if HW_p != HW:
        out = out.reshape(NS, C, HW_p)[:, :, :HW]
    # Row-major reinterpretation back to the PyTorch output layout.
    return out.reshape(N, C, S, H, W)


def ca_layers_ref(sil_feat, par_feat, w1, w2):
    """Pure-JAX reference mirroring the PyTorch forward exactly (bias=False)."""
    N, C, S, H, W = sil_feat.shape
    sil_flat = sil_feat.reshape(N * S, C, H, W)
    par_flat = par_feat.reshape(N * S, C, H, W)
    concat = jnp.concatenate([sil_flat, par_flat], axis=1)       # (NS, 2C, H, W)
    att = concat.mean(axis=(2, 3))                               # (NS, 2C)
    att = jnp.maximum(
        jnp.matmul(att, w1.T, precision=jax.lax.Precision.HIGHEST), 0.0)
    att = jax.nn.sigmoid(
        jnp.matmul(att, w2.T, precision=jax.lax.Precision.HIGHEST))
    aligned = concat * att[:, :, None, None]
    sil_a, par_a = aligned[:, :C], aligned[:, C:]
    return (sil_a + par_a).reshape(N, C, S, H, W)


if __name__ == "__main__":
    # Keep every matmul (reference and kernel trace) at full f32 precision so
    # the parity check below is meaningful.
    jax.config.update("jax_default_matmul_precision", "highest")

    # Small shapes implied by the forward: x ~ (N, C, S, H, W)
    N, C, S, H, W = 2, 4, 8, 16, 16
    channels = 2 * C            # fc operates on the concatenated 2C vector
    reduction = 4
    hid = channels // reduction

    key = jax.random.PRNGKey(0)
    k1, k2, k3, k4 = jax.random.split(key, 4)
    sil_feat = jax.random.normal(k1, (N, C, S, H, W), dtype=jnp.float32)
    par_feat = jax.random.normal(k2, (N, C, S, H, W), dtype=jnp.float32)
    # Deterministic synthetic parameters (nn.Linear weights, bias=False).
    w1 = 0.1 * jax.random.normal(k3, (hid, channels), dtype=jnp.float32)   # fc1
    w2 = 0.1 * jax.random.normal(k4, (channels, hid), dtype=jnp.float32)   # fc2

    out = jax.block_until_ready(ca_layers_forward(sil_feat, par_feat, w1, w2))
    ref = jax.block_until_ready(ca_layers_ref(sil_feat, par_feat, w1, w2))
    np.testing.assert_allclose(np.asarray(out), np.asarray(ref),
                               rtol=1e-5, atol=2e-5)

    print("KERNEL_OK")
</pallas_src>

<mosaic_0001>
module attributes {stable_mosaic.version = 11 : i64} {
  func.func @kernel(%arg0: i32, %arg1: memref<8x1024xf32, #tpu.memory_space<vmem>>, %arg2: memref<8x1024xf32, #tpu.memory_space<vmem>>, %arg3: memref<8x2xf32, #tpu.memory_space<vmem>>, %arg4: memref<2x8xf32, #tpu.memory_space<vmem>>, %arg5: memref<8x1024xf32, #tpu.memory_space<vmem>>, %arg6: memref<8x8xf32, #tpu.memory_space<vmem>>) attributes {dimension_semantics = [#tpu.dimension_semantics<parallel>], iteration_bounds = array<i64: 2>, scalar_prefetch = 0 : i64, scratch_operands = 1 : i64, tpu.core_type = #tpu.core_type<tc>, window_params = [{transform_indices = @transform_0, window_bounds = array<i64: 8, 1024>}, {transform_indices = @transform_1, window_bounds = array<i64: 8, 1024>}, {pipeline_mode = #tpu.pipeline_mode<synchronous>, transform_indices = @transform_2, window_bounds = array<i64: 8, 2>}, {pipeline_mode = #tpu.pipeline_mode<synchronous>, transform_indices = @transform_3, window_bounds = array<i64: 2, 8>}, {transform_indices = @transform_4, window_bounds = array<i64: 8, 1024>}]} {
    %c0 = arith.constant 0 : index
    %c0_0 = arith.constant 0 : index
    %0 = vector.load %arg1[%c0, %c0_0] : memref<8x1024xf32, #tpu.memory_space<vmem>>, vector<8x256xf32>
    %cst = arith.constant dense<0.000000e+00> : vector<8xf32>
    %1 = vector.multi_reduction <add>, %0, %cst [1] : vector<8x256xf32> to vector<8xf32>
    %2 = vector.shape_cast %1 : vector<8xf32> to vector<8x1xf32>
    %cst_1 = arith.constant 3.906250e-03 : f32
    %3 = vector.broadcast %cst_1 : f32 to vector<8x1xf32>
    %4 = arith.mulf %2, %3 : vector<8x1xf32>
    %c0_2 = arith.constant 0 : index
    %c0_3 = arith.constant 0 : index
    %5 = vector.load %arg6[%c0_2, %c0_3] : memref<8x8xf32, #tpu.memory_space<vmem>>, vector<8x1xf32>
    tpu.vector_store %arg6[%c0_2, %c0_3], %4 {strides = array<i32>} : memref<8x8xf32, #tpu.memory_space<vmem>>, vector<8x1xf32>,
    %c0_4 = arith.constant 0 : index
    %c0_5 = arith.constant 0 : index
    %6 = vector.load %arg2[%c0_4, %c0_5] : memref<8x1024xf32, #tpu.memory_space<vmem>>, vector<8x256xf32>
    %cst_6 = arith.constant dense<0.000000e+00> : vector<8xf32>
    %7 = vector.multi_reduction <add>, %6, %cst_6 [1] : vector<8x256xf32> to vector<8xf32>
    %8 = vector.shape_cast %7 : vector<8xf32> to vector<8x1xf32>
    %cst_7 = arith.constant 3.906250e-03 : f32
    %9 = vector.broadcast %cst_7 : f32 to vector<8x1xf32>
    %10 = arith.mulf %8, %9 : vector<8x1xf32>
    %c0_8 = arith.constant 0 : index
    %c4 = arith.constant 4 : index
    %11 = vector.load %arg6[%c0_8, %c4] : memref<8x8xf32, #tpu.memory_space<vmem>>, vector<8x1xf32>
    tpu.vector_store %arg6[%c0_8, %c4], %10 {strides = array<i32>} : memref<8x8xf32, #tpu.memory_space<vmem>>, vector<8x1xf32>,
    %c0_9 = arith.constant 0 : index
    %c256 = arith.constant 256 : index
    %12 = vector.load %arg1[%c0_9, %c256] : memref<8x1024xf32, #tpu.memory_space<vmem>>, vector<8x256xf32>
    %cst_10 = arith.constant dense<0.000000e+00> : vector<8xf32>
    %13 = vector.multi_reduction <add>, %12, %cst_10 [1] : vector<8x256xf32> to vector<8xf32>
    %14 = vector.shape_cast %13 : vector<8xf32> to vector<8x1xf32>
    %cst_11 = arith.constant 3.906250e-03 : f32
    %15 = vector.broadcast %cst_11 : f32 to vector<8x1xf32>
    %16 = arith.mulf %14, %15 : vector<8x1xf32>
    %c0_12 = arith.constant 0 : index
    %c1 = arith.constant 1 : index
    %17 = vector.load %arg6[%c0_12, %c1] : memref<8x8xf32, #tpu.memory_space<vmem>>, vector<8x1xf32>
    tpu.vector_store %arg6[%c0_12, %c1], %16 {strides = array<i32>} : memref<8x8xf32, #tpu.memory_space<vmem>>, vector<8x1xf32>,
    %c0_13 = arith.constant 0 : index
    %c256_14 = arith.constant 256 : index
    %18 = vector.load %arg2[%c0_13, %c256_14] : memref<8x1024xf32, #tpu.memory_space<vmem>>, vector<8x256xf32>
    %cst_15 = arith.constant dense<0.000000e+00> : vector<8xf32>
    %19 = vector.multi_reduction <add>, %18, %cst_15 [1] : vector<8x256xf32> to vector<8xf32>
    %20 = vector.shape_cast %19 : vector<8xf32> to vector<8x1xf32>
    %cst_16 = arith.constant 3.906250e-03 : f32
    %21 = vector.broadcast %cst_16 : f32 to vector<8x1xf32>
    %22 = arith.mulf %20, %21 : vector<8x1xf32>
    %c0_17 = arith.constant 0 : index
    %c5 = arith.constant 5 : index
    %23 = vector.load %arg6[%c0_17, %c5] : memref<8x8xf32, #tpu.memory_space<vmem>>, vector<8x1xf32>
    tpu.vector_store %arg6[%c0_17, %c5], %22 {strides = array<i32>} : memref<8x8xf32, #tpu.memory_space<vmem>>, vector<8x1xf32>,
    %c0_18 = arith.constant 0 : index
    %c512 = arith.constant 512 : index
    %24 = vector.load %arg1[%c0_18, %c512] : memref<8x1024xf32, #tpu.memory_space<vmem>>, vector<8x256xf32>
    %cst_19 = arith.constant dense<0.000000e+00> : vector<8xf32>
    %25 = vector.multi_reduction <add>, %24, %cst_19 [1] : vector<8x256xf32> to vector<8xf32>
    %26 = vector.shape_cast %25 : vector<8xf32> to vector<8x1xf32>
    %cst_20 = arith.constant 3.906250e-03 : f32
    %27 = vector.broadcast %cst_20 : f32 to vector<8x1xf32>
    %28 = arith.mulf %26, %27 : vector<8x1xf32>
    %c0_21 = arith.constant 0 : index
    %c2 = arith.constant 2 : index
    %29 = vector.load %arg6[%c0_21, %c2] : memref<8x8xf32, #tpu.memory_space<vmem>>, vector<8x1xf32>
    tpu.vector_store %arg6[%c0_21, %c2], %28 {strides = array<i32>} : memref<8x8xf32, #tpu.memory_space<vmem>>, vector<8x1xf32>,
    %c0_22 = arith.constant 0 : index
    %c512_23 = arith.constant 512 : index
    %30 = vector.load %arg2[%c0_22, %c512_23] : memref<8x1024xf32, #tpu.memory_space<vmem>>, vector<8x256xf32>
    %cst_24 = arith.constant dense<0.000000e+00> : vector<8xf32>
    %31 = vector.multi_reduction <add>, %30, %cst_24 [1] : vector<8x256xf32> to vector<8xf32>
    %32 = vector.shape_cast %31 : vector<8xf32> to vector<8x1xf32>
    %cst_25 = arith.constant 3.906250e-03 : f32
    %33 = vector.broadcast %cst_25 : f32 to vector<8x1xf32>
    %34 = arith.mulf %32, %33 : vector<8x1xf32>
    %c0_26 = arith.constant 0 : index
    %c6 = arith.constant 6 : index
    %35 = vector.load %arg6[%c0_26, %c6] : memref<8x8xf32, #tpu.memory_space<vmem>>, vector<8x1xf32>
    tpu.vector_store %arg6[%c0_26, %c6], %34 {strides = array<i32>} : memref<8x8xf32, #tpu.memory_space<vmem>>, vector<8x1xf32>,
    %c0_27 = arith.constant 0 : index
    %c768 = arith.constant 768 : index
    %36 = vector.load %arg1[%c0_27, %c768] : memref<8x1024xf32, #tpu.memory_space<vmem>>, vector<8x256xf32>
    %cst_28 = arith.constant dense<0.000000e+00> : vector<8xf32>
    %37 = vector.multi_reduction <add>, %36, %cst_28 [1] : vector<8x256xf32> to vector<8xf32>
    %38 = vector.shape_cast %37 : vector<8xf32> to vector<8x1xf32>
    %cst_29 = arith.constant 3.906250e-03 : f32
    %39 = vector.broadcast %cst_29 : f32 to vector<8x1xf32>
    %40 = arith.mulf %38, %39 : vector<8x1xf32>
    %c0_30 = arith.constant 0 : index
    %c3 = arith.constant 3 : index
    %41 = vector.load %arg6[%c0_30, %c3] : memref<8x8xf32, #tpu.memory_space<vmem>>, vector<8x1xf32>
    tpu.vector_store %arg6[%c0_30, %c3], %40 {strides = array<i32>} : memref<8x8xf32, #tpu.memory_space<vmem>>, vector<8x1xf32>,
    %c0_31 = arith.constant 0 : index
    %c768_32 = arith.constant 768 : index
    %42 = vector.load %arg2[%c0_31, %c768_32] : memref<8x1024xf32, #tpu.memory_space<vmem>>, vector<8x256xf32>
    %cst_33 = arith.constant dense<0.000000e+00> : vector<8xf32>
    %43 = vector.multi_reduction <add>, %42, %cst_33 [1] : vector<8x256xf32> to vector<8xf32>
    %44 = vector.shape_cast %43 : vector<8xf32> to vector<8x1xf32>
    %cst_34 = arith.constant 3.906250e-03 : f32
    %45 = vector.broadcast %cst_34 : f32 to vector<8x1xf32>
    %46 = arith.mulf %44, %45 : vector<8x1xf32>
    %c0_35 = arith.constant 0 : index
    %c7 = arith.constant 7 : index
    %47 = vector.load %arg6[%c0_35, %c7] : memref<8x8xf32, #tpu.memory_space<vmem>>, vector<8x1xf32>
    tpu.vector_store %arg6[%c0_35, %c7], %46 {strides = array<i32>} : memref<8x8xf32, #tpu.memory_space<vmem>>, vector<8x1xf32>,
    %c0_36 = arith.constant 0 : index
    %c0_37 = arith.constant 0 : index
    %48 = vector.load %arg6[%c0_36, %c0_37] : memref<8x8xf32, #tpu.memory_space<vmem>>, vector<8x8xf32>
    %c0_38 = arith.constant 0 : index
    %c0_39 = arith.constant 0 : index
    %49 = vector.load %arg3[%c0_38, %c0_39] : memref<8x2xf32, #tpu.memory_space<vmem>>, vector<8x2xf32>
    %cst_40 = arith.constant dense<0.000000e+00> : vector<8x2xf32>
    %50 = tpu.matmul %48, %49, %cst_40 {dimension_numbers = #tpu.dot_dimension_numbers<[1], [0], [0], [1], [0, 0, 1, 1], [], []>, precision = #tpu.contract_precision<fp32>} : vector<8x8xf32>, vector<8x2xf32>, vector<8x2xf32> -> vector<8x2xf32>
    %cst_41 = arith.constant 0.000000e+00 : f32
    %51 = vector.broadcast %cst_41 : f32 to vector<8x2xf32>
    %52 = arith.maximumf %50, %51 : vector<8x2xf32>
    %c0_42 = arith.constant 0 : index
    %c0_43 = arith.constant 0 : index
    %53 = vector.load %arg4[%c0_42, %c0_43] : memref<2x8xf32, #tpu.memory_space<vmem>>, vector<2x8xf32>
    %cst_44 = arith.constant dense<0.000000e+00> : vector<8x8xf32>
    %54 = tpu.matmul %52, %53, %cst_44 {dimension_numbers = #tpu.dot_dimension_numbers<[1], [0], [0], [1], [0, 0, 1, 1], [], []>, precision = #tpu.contract_precision<fp32>} : vector<8x2xf32>, vector<2x8xf32>, vector<8x8xf32> -> vector<8x8xf32>
    %55 = arith.negf %54 : vector<8x8xf32>
    %56 = math.exp %55 : vector<8x8xf32>
    %cst_45 = arith.constant 1.000000e+00 : f32
    %57 = vector.broadcast %cst_45 : f32 to vector<8x8xf32>
    %58 = arith.addf %57, %56 : vector<8x8xf32>
    %59 = arith.divf %57, %58 : vector<8x8xf32>
    %c0_46 = arith.constant 0 : index
    %c0_47 = arith.constant 0 : index
    %60 = vector.load %arg1[%c0_46, %c0_47] : memref<8x1024xf32, #tpu.memory_space<vmem>>, vector<8x256xf32>
    %61 = vector.extract_strided_slice %59 {offsets = [0, 0], sizes = [8, 1], strides = [1, 1]} : vector<8x8xf32> to vector<8x1xf32>
    %62 = vector.broadcast %61 : vector<8x1xf32> to vector<8x256xf32>
    %63 = arith.mulf %60, %62 : vector<8x256xf32>
    %c0_48 = arith.constant 0 : index
    %c0_49 = arith.constant 0 : index
    %64 = vector.load %arg2[%c0_48, %c0_49] : memref<8x1024xf32, #tpu.memory_space<vmem>>, vector<8x256xf32>
    %65 = vector.extract_strided_slice %59 {offsets = [0, 4], sizes = [8, 1], strides = [1, 1]} : vector<8x8xf32> to vector<8x1xf32>
    %66 = vector.broadcast %65 : vector<8x1xf32> to vector<8x256xf32>
    %67 = arith.mulf %64, %66 : vector<8x256xf32>
    %68 = arith.addf %63, %67 : vector<8x256xf32>
    %c0_50 = arith.constant 0 : index
    %c0_51 = arith.constant 0 : index
    %69 = vector.load %arg5[%c0_50, %c0_51] : memref<8x1024xf32, #tpu.memory_space<vmem>>, vector<8x256xf32>
    tpu.vector_store %arg5[%c0_50, %c0_51], %68 {strides = array<i32>} : memref<8x1024xf32, #tpu.memory_space<vmem>>, vector<8x256xf32>,
    %c0_52 = arith.constant 0 : index
    %c256_53 = arith.constant 256 : index
    %70 = vector.load %arg1[%c0_52, %c256_53] : memref<8x1024xf32, #tpu.memory_space<vmem>>, vector<8x256xf32>
    %71 = vector.extract_strided_slice %59 {offsets = [0, 1], sizes = [8, 1], strides = [1, 1]} : vector<8x8xf32> to vector<8x1xf32>
    %72 = vector.broadcast %71 : vector<8x1xf32> to vector<8x256xf32>
    %73 = arith.mulf %70, %72 : vector<8x256xf32>
    %c0_54 = arith.constant 0 : index
    %c256_55 = arith.constant 256 : index
    %74 = vector.load %arg2[%c0_54, %c256_55] : memref<8x1024xf32, #tpu.memory_space<vmem>>, vector<8x256xf32>
    %75 = vector.extract_strided_slice %59 {offsets = [0, 5], sizes = [8, 1], strides = [1, 1]} : vector<8x8xf32> to vector<8x1xf32>
    %76 = vector.broadcast %75 : vector<8x1xf32> to vector<8x256xf32>
    %77 = arith.mulf %74, %76 : vector<8x256xf32>
    %78 = arith.addf %73, %77 : vector<8x256xf32>
    %c0_56 = arith.constant 0 : index
    %c256_57 = arith.constant 256 : index
    %79 = vector.load %arg5[%c0_56, %c256_57] : memref<8x1024xf32, #tpu.memory_space<vmem>>, vector<8x256xf32>
    tpu.vector_store %arg5[%c0_56, %c256_57], %78 {strides = array<i32>} : memref<8x1024xf32, #tpu.memory_space<vmem>>, vector<8x256xf32>,
    %c0_58 = arith.constant 0 : index
    %c512_59 = arith.constant 512 : index
    %80 = vector.load %arg1[%c0_58, %c512_59] : memref<8x1024xf32, #tpu.memory_space<vmem>>, vector<8x256xf32>
    %81 = vector.extract_strided_slice %59 {offsets = [0, 2], sizes = [8, 1], strides = [1, 1]} : vector<8x8xf32> to vector<8x1xf32>
    %82 = vector.broadcast %81 : vector<8x1xf32> to vector<8x256xf32>
    %83 = arith.mulf %80, %82 : vector<8x256xf32>
    %c0_60 = arith.constant 0 : index
    %c512_61 = arith.constant 512 : index
    %84 = vector.load %arg2[%c0_60, %c512_61] : memref<8x1024xf32, #tpu.memory_space<vmem>>, vector<8x256xf32>
    %85 = vector.extract_strided_slice %59 {offsets = [0, 6], sizes = [8, 1], strides = [1, 1]} : vector<8x8xf32> to vector<8x1xf32>
    %86 = vector.broadcast %85 : vector<8x1xf32> to vector<8x256xf32>
    %87 = arith.mulf %84, %86 : vector<8x256xf32>
    %88 = arith.addf %83, %87 : vector<8x256xf32>
    %c0_62 = arith.constant 0 : index
    %c512_63 = arith.constant 512 : index
    %89 = vector.load %arg5[%c0_62, %c512_63] : memref<8x1024xf32, #tpu.memory_space<vmem>>, vector<8x256xf32>
    tpu.vector_store %arg5[%c0_62, %c512_63], %88 {strides = array<i32>} : memref<8x1024xf32, #tpu.memory_space<vmem>>, vector<8x256xf32>,
    %c0_64 = arith.constant 0 : index
    %c768_65 = arith.constant 768 : index
    %90 = vector.load %arg1[%c0_64, %c768_65] : memref<8x1024xf32, #tpu.memory_space<vmem>>, vector<8x256xf32>
    %91 = vector.extract_strided_slice %59 {offsets = [0, 3], sizes = [8, 1], strides = [1, 1]} : vector<8x8xf32> to vector<8x1xf32>
    %92 = vector.broadcast %91 : vector<8x1xf32> to vector<8x256xf32>
    %93 = arith.mulf %90, %92 : vector<8x256xf32>
    %c0_66 = arith.constant 0 : index
    %c768_67 = arith.constant 768 : index
    %94 = vector.load %arg2[%c0_66, %c768_67] : memref<8x1024xf32, #tpu.memory_space<vmem>>, vector<8x256xf32>
    %95 = vector.extract_strided_slice %59 {offsets = [0, 7], sizes = [8, 1], strides = [1, 1]} : vector<8x8xf32> to vector<8x1xf32>
    %96 = vector.broadcast %95 : vector<8x1xf32> to vector<8x256xf32>
    %97 = arith.mulf %94, %96 : vector<8x256xf32>
    %98 = arith.addf %93, %97 : vector<8x256xf32>
    %c0_68 = arith.constant 0 : index
    %c768_69 = arith.constant 768 : index
    %99 = vector.load %arg5[%c0_68, %c768_69] : memref<8x1024xf32, #tpu.memory_space<vmem>>, vector<8x256xf32>
    tpu.vector_store %arg5[%c0_68, %c768_69], %98 {strides = array<i32>} : memref<8x1024xf32, #tpu.memory_space<vmem>>, vector<8x256xf32>,
    return
  }
  func.func @transform_0(%arg0: i32) -> (i32, i32) {
    %c0_i32 = arith.constant 0 : i32
    %c0_i32_0 = arith.constant 0 : i32
    return %arg0, %c0_i32 : i32, i32
  }
  func.func @transform_1(%arg0: i32) -> (i32, i32) {
    %c0_i32 = arith.constant 0 : i32
    %c0_i32_0 = arith.constant 0 : i32
    return %arg0, %c0_i32 : i32, i32
  }
  func.func @transform_2(%arg0: i32) -> (i32, i32) {
    %c0_i32 = arith.constant 0 : i32
    %c0_i32_0 = arith.constant 0 : i32
    %c0_i32_1 = arith.constant 0 : i32
    return %c0_i32, %c0_i32_0 : i32, i32
  }
  func.func @transform_3(%arg0: i32) -> (i32, i32) {
    %c0_i32 = arith.constant 0 : i32
    %c0_i32_0 = arith.constant 0 : i32
    %c0_i32_1 = arith.constant 0 : i32
    return %c0_i32, %c0_i32_0 : i32, i32
  }
  func.func @transform_4(%arg0: i32) -> (i32, i32) {
    %c0_i32 = arith.constant 0 : i32
    %c0_i32_0 = arith.constant 0 : i32
    return %arg0, %c0_i32 : i32, i32
  }
}

</mosaic_0001>

<llo_original>
// kernel: tpu_custom_call.1
$region0: #{tpu_custom_call.1}
  #allocation0 [shape = 'u32[]', space=smem, size = 0x4, offset = 0x4, fixed_abs, tag = 'smem constant byte address 0x4 - core index']
  #allocation1 [shape = 'u32[72,128]{1,0:T(1,128)}', space=vmem, size = 0x9000, scoped, tag = 'internal scratch']
  #allocation2 [shape = 'f32[8,8]{1,0:T(8,128)}', space=vmem, size = 0x1000, scoped, tag = 'scratch operand']
  %s0 = inlined_call_operand.hbm [shape: f32[16,1024], index: 0, kind: input, shape index: {}]
  %s1 = inlined_call_operand.hbm [shape: f32[16,1024], index: 1, kind: input, shape index: {}]
  %s2 = inlined_call_operand.vmem [shape: f32[8,2], index: 2, kind: input, shape index: {}]
  %s3 = inlined_call_operand.vmem [shape: f32[2,8], index: 3, kind: input, shape index: {}]
  %s4 = inlined_call_operand.hbm [shape: f32[16,1024], index: 4, kind: output, shape index: {}]
  %s5 = sld [smem:[#allocation0]]
  $region57: #{tpu_custom_call.1} parent=0
    _
  %s7 = ssub.s32 1, %s5
  %s8 = scalar_select 0, %s7, %s5
  $region1: #{tpu_custom_call.1} parent=0
    #allocation3 [shape = 'u8[65536]{0}', space=vmem, size = 0x10000, scoped, tag = 'input window, operand 0']
    #allocation4 [shape = 's32[2]{0}', space=sflag, size = 0x8, scoped, tag = 'scoped memory for tpu_custom_call.1']
    #allocation5 [shape = 's32[2]{0}', space=sflag, size = 0x8, scoped, tag = 'scoped memory for tpu_custom_call.1']
    #allocation6 [shape = 'u8[65536]{0}', space=vmem, size = 0x10000, scoped, tag = 'input window, operand 1']
    #allocation7 [shape = 's32[2]{0}', space=sflag, size = 0x8, scoped, tag = 'scoped memory for tpu_custom_call.1']
    #allocation8 [shape = 'u8[65536]{0}', space=vmem, size = 0x10000, scoped, tag = 'output window, operand 0']
    %9 = vsyncpa [#allocation4], 0
    %s10 = scalar_lea.sflag [#allocation4], 1
    %11 = vsyncpa %s10, 0
    %12 = vsyncpa [#allocation7], 0
    %s13 = scalar_lea.sflag [#allocation7], 1
    %14 = vsyncpa %s13, 0
    %15 = vsyncpa [#allocation5], 0
    %s16 = scalar_lea.sflag [#allocation5], 1
    %17 = vsyncpa %s16, 0
    loop: start=0, step=1, limit=4
    $region2: #{tpu_custom_call.1} parent=1 // loop_pre_header
      _
    $region3: #{tpu_custom_call.1} parent=1 // loop_header
      %s19 = sphi 0, %s23
      %p20 = scmp.ge.s32.totalorder %s19, 4
      %s29 = sphi 0, %s31
      %s32 = sphi 0, %s29
      %s33 = sphi 0, %s32
      %s49 = sphi 0, %s33
      %s55 = sphi 0, %s57
      %s58 = sphi 0, %s55
      %s59 = sphi 0, %s58
      %s75 = sphi 0, %s59
      %s79 = sphi 0, %s79
      %s81 = sphi 0, %s79
      %s82 = sphi 0, %s81
      %s96 = sphi 0, %s82
      %s100 = sphi 0, %s100
      %s102 = sphi 0, %s100
      %s103 = sphi 0, %s102
      %s117 = sphi 0, %s103
      %s123 = sphi 0, %s125
      %s126 = sphi 0, %s123
      %s127 = sphi 0, %s126
      %s143 = sphi 0, %s127
    $region4: #{tpu_custom_call.1} parent=1 // loop_header_branch
      %22 = sbr.rel (%p20) target = $region8
    $region5: #{tpu_custom_call.1} parent=1 // loop_body
      %s24 = ssub.s32 %s19, 1
      %s25 = ssub.s32 %s19, 2
      %s26 = sadd.s32 %s19, 1
      %s27 = ssub.s32 %s19, %s26
      %p28 = scmp.eq.s32.totalorder %s27, 0
      %s30 = sadd.s32 %s29, 1
      %s31 = scalar_select %p28, %s29, %s30
      %p34 = pneg %p28
      %p35 = scmp.eq.s32.totalorder %s19, 1
      %p36 = por %p34, %p35
      %p37 = scmp.ne.s32.totalorder %s29, %s32
      %p38 = scmp.eq.s32.totalorder %s19, 0
      %p39 = por %p37, %p38
      %p40 = scmp.ne.s32.totalorder %s29, %s32
      %p41 = scmp.eq.s32.totalorder %s24, 1
      %p42 = por %p40, %p41
      %p43 = scmp.ne.s32.totalorder %s32, %s33
      %p44 = scmp.eq.s32.totalorder %s24, 0
      %p45 = por %p43, %p44
      %p46 = scmp.ne.s32.totalorder %s32, %s33
      %p47 = scmp.eq.s32.totalorder %s25, 1
      %p48 = por %p46, %p47
      %p50 = scmp.ne.s32.totalorder %s33, %s49
      %p51 = scmp.eq.s32.totalorder %s25, 0
      %p52 = por %p50, %p51
      %s53 = ssub.s32 %s19, %s26
      %p54 = scmp.eq.s32.totalorder %s53, 0
      %s56 = sadd.s32 %s55, 1
      %s57 = scalar_select %p54, %s55, %s56
      %p60 = pneg %p54
      %p61 = scmp.eq.s32.totalorder %s19, 1
      %p62 = por %p60, %p61
      %p63 = scmp.ne.s32.totalorder %s55, %s58
      %p64 = scmp.eq.s32.totalorder %s19, 0
      %p65 = por %p63, %p64
      %p66 = scmp.ne.s32.totalorder %s55, %s58
      %p67 = scmp.eq.s32.totalorder %s24, 1
      %p68 = por %p66, %p67
      %p69 = scmp.ne.s32.totalorder %s58, %s59
      %p70 = scmp.eq.s32.totalorder %s24, 0
      %p71 = por %p69, %p70
      %p72 = scmp.ne.s32.totalorder %s58, %s59
      %p73 = scmp.eq.s32.totalorder %s25, 1
      %p74 = por %p72, %p73
      %p76 = scmp.ne.s32.totalorder %s59, %s75
      %p77 = scmp.eq.s32.totalorder %s25, 0
      %p78 = por %p76, %p77
      %s80 = sadd.s32 %s79, 1
      %p83 = scmp.eq.s32.totalorder %s19, 1
      %p84 = scmp.ne.s32.totalorder %s79, %s81
      %p85 = scmp.eq.s32.totalorder %s19, 0
      %p86 = por %p84, %p85
      %p87 = scmp.ne.s32.totalorder %s79, %s81
      %p88 = scmp.eq.s32.totalorder %s24, 1
      %p89 = por %p87, %p88
      %p90 = scmp.ne.s32.totalorder %s81, %s82
      %p91 = scmp.eq.s32.totalorder %s24, 0
      %p92 = por %p90, %p91
      %p93 = scmp.ne.s32.totalorder %s81, %s82
      %p94 = scmp.eq.s32.totalorder %s25, 1
      %p95 = por %p93, %p94
      %p97 = scmp.ne.s32.totalorder %s82, %s96
      %p98 = scmp.eq.s32.totalorder %s25, 0
      %p99 = por %p97, %p98
      %s101 = sadd.s32 %s100, 1
      %p104 = scmp.eq.s32.totalorder %s19, 1
      %p105 = scmp.ne.s32.totalorder %s100, %s102
      %p106 = scmp.eq.s32.totalorder %s19, 0
      %p107 = por %p105, %p106
      %p108 = scmp.ne.s32.totalorder %s100, %s102
      %p109 = scmp.eq.s32.totalorder %s24, 1
      %p110 = por %p108, %p109
      %p111 = scmp.ne.s32.totalorder %s102, %s103
      %p112 = scmp.eq.s32.totalorder %s24, 0
      %p113 = por %p111, %p112
      %p114 = scmp.ne.s32.totalorder %s102, %s103
      %p115 = scmp.eq.s32.totalorder %s25, 1
      %p116 = por %p114, %p115
      %p118 = scmp.ne.s32.totalorder %s103, %s117
      %p119 = scmp.eq.s32.totalorder %s25, 0
      %p120 = por %p118, %p119
      %s121 = ssub.s32 %s19, %s26
      %p122 = scmp.eq.s32.totalorder %s121, 0
      %s124 = sadd.s32 %s123, 1
      %s125 = scalar_select %p122, %s123, %s124
      %p128 = pneg %p122
      %p129 = scmp.eq.s32.totalorder %s19, 1
      %p130 = por %p128, %p129
      %p131 = scmp.ne.s32.totalorder %s123, %s126
      %p132 = scmp.eq.s32.totalorder %s19, 0
      %p133 = por %p131, %p132
      %p134 = scmp.ne.s32.totalorder %s123, %s126
      %p135 = scmp.eq.s32.totalorder %s24, 1
      %p136 = por %p134, %p135
      %p137 = scmp.ne.s32.totalorder %s126, %s127
      %p138 = scmp.eq.s32.totalorder %s24, 0
      %p139 = por %p137, %p138
      %p140 = scmp.ne.s32.totalorder %s126, %s127
      %p141 = scmp.eq.s32.totalorder %s25, 1
      %p142 = por %p140, %p141
      %p144 = scmp.ne.s32.totalorder %s127, %s143
      %p145 = scmp.eq.s32.totalorder %s25, 0
      %p146 = por %p144, %p145
      %p147 = scmp.le.s32.totalorder 1, %s19
      %p148 = scmp.lt.s32.totalorder %s19, 3
      %p149 = pnand %p147, %p148
      %p150 = pneg %p149
      // Predicated region
      $region9: #{tpu_custom_call.1} parent=5 // pred_check
        _
      $region10: #{tpu_custom_call.1} parent=5 // pred_check_branch
        %152 = sbr.rel (%p149) target = $region12
      $region11: #{tpu_custom_call.1} parent=5 // pred_region
        %s153 = ssub.s32 %s19, 1
        // Predicated region
        $region13: #{tpu_custom_call.1} parent=11 // pred_check
          %p154 = pneg %p92
        $region14: #{tpu_custom_call.1} parent=11 // pred_check_branch
          %156 = sbr.rel (%p154) target = $region16
        $region15: #{tpu_custom_call.1} parent=11 // pred_region
          _
        $region16: #{tpu_custom_call.1} parent=11 // pred_fallthru
          _
        // Predicated region
        $region17: #{tpu_custom_call.1} parent=11 // pred_check
          %p157 = pneg %p113
        $region18: #{tpu_custom_call.1} parent=11 // pred_check_branch
          %159 = sbr.rel (%p157) target = $region20
        $region19: #{tpu_custom_call.1} parent=11 // pred_region
          _
        $region20: #{tpu_custom_call.1} parent=11 // pred_fallthru
          _
      $region12: #{tpu_custom_call.1} parent=5 // pred_fallthru
        _
      %p160 = scmp.lt.s32.totalorder %s19, 2
      // Predicated region
      $region21: #{tpu_custom_call.1} parent=5 // pred_check
        %p161 = pneg %p160
      $region22: #{tpu_custom_call.1} parent=5 // pred_check_branch
        %163 = sbr.rel (%p161) target = $region24
      $region23: #{tpu_custom_call.1} parent=5 // pred_region
        // Predicated region
        $region25: #{tpu_custom_call.1} parent=23 // pred_check
          %p164 = pneg %p39
        $region26: #{tpu_custom_call.1} parent=23 // pred_check_branch
          %166 = sbr.rel (%p164) target = $region28
        $region27: #{tpu_custom_call.1} parent=23 // pred_region
          %s167 = sand.u32 %s29, 1
          %s168 = scalar_lea.sflag [#allocation4], %s167
          %s169 = sand.u32 %s29, 1
          %s170 = smul.addr %s169, 64
          %s171 = scalar_lea.vmem [#allocation3], %s170
          %173 = vsyncadd %s168, 0
          %s174 = smul.addr %s19, 8
          %s175 = smul.addr %s174, 8
          %s176 = scalar_lea.hbm %s0, %s175
          %s178 = sshll.u32 %s176, 4
          %s179 = int_to_ptr.hbm [resolvable:$true] %s178
          %s180 = sshll.u32 %s171, 4
          %s181 = int_to_ptr.vmem [resolvable:$true] %s180
          %183 = dma.hbm_to_vmem [thread:$0]  %s179, 1024, %s181, %s168
        $region28: #{tpu_custom_call.1} parent=23 // pred_fallthru
          _
        // Predicated region
        $region29: #{tpu_custom_call.1} parent=23 // pred_check
          %p184 = pneg %p65
        $region30: #{tpu_custom_call.1} parent=23 // pred_check_branch
          %186 = sbr.rel (%p184) target = $region32
        $region31: #{tpu_custom_call.1} parent=23 // pred_region
          %s187 = sand.u32 %s55, 1
          %s188 = scalar_lea.sflag [#allocation7], %s187
          %s189 = sand.u32 %s55, 1
          %s190 = smul.addr %s189, 64
          %s191 = scalar_lea.vmem [#allocation6], %s190
          %193 = vsyncadd %s188, 0
          %s194 = smul.addr %s19, 8
          %s195 = smul.addr %s194, 8
          %s196 = scalar_lea.hbm %s1, %s195
          %s198 = sshll.u32 %s196, 4
          %s199 = int_to_ptr.hbm [resolvable:$true] %s198
          %s200 = sshll.u32 %s191, 4
          %s201 = int_to_ptr.vmem [resolvable:$true] %s200
          %203 = dma.hbm_to_vmem [thread:$0]  %s199, 1024, %s201, %s188
        $region32: #{tpu_custom_call.1} parent=23 // pred_fallthru
          _
      $region24: #{tpu_custom_call.1} parent=5 // pred_fallthru
        _
      %p204 = scmp.le.s32.totalorder 1, %s19
      %p205 = scmp.lt.s32.totalorder %s19, 3
      %p206 = pnand %p204, %p205
      %p207 = pneg %p206
      // Predicated region
      $region33: #{tpu_custom_call.1} parent=5 // pred_check
        _
      $region34: #{tpu_custom_call.1} parent=5 // pred_check_branch
        %209 = sbr.rel (%p206) target = $region36
      $region35: #{tpu_custom_call.1} parent=5 // pred_region
        %s210 = ssub.s32 %s19, 1
        %s211 = sand.u32 %s32, 1
        %s212 = scalar_lea.sflag [#allocation4], %s211
        %s213 = sand.u32 %s32, 1
        %s214 = smul.addr %s213, 64
        %s215 = scalar_lea.vmem [#allocation3], %s214
        // Predicated region
        $region37: #{tpu_custom_call.1} parent=35 // pred_check
          %p216 = pneg %p45
        $region38: #{tpu_custom_call.1} parent=35 // pred_check_branch
          %218 = sbr.rel (%p216) target = $region40
        $region39: #{tpu_custom_call.1} parent=35 // pred_region
          %220 = dma.done %s212, 1024
        $region40: #{tpu_custom_call.1} parent=35 // pred_fallthru
          _
        %s221 = sand.u32 %s58, 1
        %s222 = scalar_lea.sflag [#allocation7], %s221
        %s223 = sand.u32 %s58, 1
        %s224 = smul.addr %s223, 64
        %s225 = scalar_lea.vmem [#allocation6], %s224
        // Predicated region
        $region41: #{tpu_custom_call.1} parent=35 // pred_check
          %p226 = pneg %p71
        $region42: #{tpu_custom_call.1} parent=35 // pred_check_branch
          %228 = sbr.rel (%p226) target = $region44
        $region43: #{tpu_custom_call.1} parent=35 // pred_region
          %230 = dma.done %s222, 1024
        $region44: #{tpu_custom_call.1} parent=35 // pred_fallthru
          _
        %s231 = sand.u32 %s32, 1
        %s232 = scalar_lea.sflag [#allocation4], %s231
        %s233 = sand.u32 %s32, 1
        %s234 = smul.addr %s233, 64
        %s235 = scalar_lea.vmem [#allocation3], %s234
        %p236 = pneg %p45
        %p237 = pneg %p42
        %s238 = sand.u32 %s58, 1
        %s239 = scalar_lea.sflag [#allocation7], %s238
        %s240 = sand.u32 %s58, 1
        %s241 = smul.addr %s240, 64
        %s242 = scalar_lea.vmem [#allocation6], %s241
        %p243 = pneg %p71
        %p244 = pneg %p68
        %p245 = pneg %p92
        %p246 = pneg %p89
        %p247 = pneg %p113
        %p248 = pneg %p110
        %p249 = pneg %p139
        %p250 = pneg %p136
        %s251 = sand.u32 %s126, 1
        %s252 = scalar_lea.sflag [#allocation5], %s251
        %s253 = sand.u32 %s126, 1
        %s254 = smul.addr %s253, 64
        %s255 = scalar_lea.vmem [#allocation8], %s254
        %v256 = vld [vmem:[%s215] sm:$0xff]
        %v257 = vld [vmem:[%s215 + $0x8] sm:$0xff]
        %v258 = vadd.f32 %v256, %v257
        %259 = vadd.xlane.f32.xlu0 %v258
        %v260 = vpop.xlane.xlu0 %259
        %v261 = vmul.f32 %v260, 0.00390625
        %vm262 = vcmask 7168
        %263 = vst.msk [vmem:[#allocation2] sm:$0xff] %vm262, %v261
        %v264 = vld [vmem:[%s225] sm:$0xff]
        %v265 = vld [vmem:[%s225 + $0x8] sm:$0xff]
        %v266 = vadd.f32 %v264, %v265
        %267 = vadd.xlane.f32.xlu0 %v266
        %v268 = vpop.xlane.xlu0 %267
        %v269 = vmul.f32 %v268, 0.00390625
        %vm270 = vcmask 39968
        %271 = vst.msk [vmem:[#allocation2] sm:$0xff] %vm270, %v269
        %v272 = vld [vmem:[%s215 + $0x10] sm:$0xff]
        %v273 = vld [vmem:[%s215 + $0x18] sm:$0xff]
        %v274 = vadd.f32 %v272, %v273
        %275 = vadd.xlane.f32.xlu0 %v274
        %v276 = vpop.xlane.xlu0 %275
        %v277 = vmul.f32 %v276, 0.00390625
        %vm278 = vcmask 15368
        %279 = vst.msk [vmem:[#allocation2] sm:$0xff] %vm278, %v277
        %v280 = vld [vmem:[%s225 + $0x10] sm:$0xff]
        %v281 = vld [vmem:[%s225 + $0x18] sm:$0xff]
        %v282 = vadd.f32 %v280, %v281
        %283 = vadd.xlane.f32.xlu0 %v282
        %v284 = vpop.xlane.xlu0 %283
        %v285 = vmul.f32 %v284, 0.00390625
        %vm286 = vcmask 48168
        %287 = vst.msk [vmem:[#allocation2] sm:$0xff] %vm286, %v285
        %v288 = vld [vmem:[%s215 + $0x20] sm:$0xff]
        %v289 = vld [vmem:[%s215 + $0x28] sm:$0xff]
        %v290 = vadd.f32 %v288, %v289
        %291 = vadd.xlane.f32.xlu0 %v290
        %v292 = vpop.xlane.xlu0 %291
        %v293 = vmul.f32 %v292, 0.00390625
        %vm294 = vcmask 23568
        %295 = vst.msk [vmem:[#allocation2] sm:$0xff] %vm294, %v293
        %v296 = vld [vmem:[%s225 + $0x20] sm:$0xff]
        %v297 = vld [vmem:[%s225 + $0x28] sm:$0xff]
        %v298 = vadd.f32 %v296, %v297
        %299 = vadd.xlane.f32.xlu0 %v298
        %v300 = vpop.xlane.xlu0 %299
        %v301 = vmul.f32 %v300, 0.00390625
        %vm302 = vcmask 56368
        %303 = vst.msk [vmem:[#allocation2] sm:$0xff] %vm302, %v301
        %v304 = vld [vmem:[%s215 + $0x30] sm:$0xff]
        %v305 = vld [vmem:[%s215 + $0x38] sm:$0xff]
        %v306 = vadd.f32 %v304, %v305
        %307 = vadd.xlane.f32.xlu0 %v306
        %v308 = vpop.xlane.xlu0 %307
        %v309 = vmul.f32 %v308, 0.00390625
        %vm310 = vcmask 31768
        %311 = vst.msk [vmem:[#allocation2] sm:$0xff] %vm310, %v309
        %v312 = vld [vmem:[%s225 + $0x30] sm:$0xff]
        %v313 = vld [vmem:[%s225 + $0x38] sm:$0xff]
        %v314 = vadd.f32 %v312, %v313
        %315 = vadd.xlane.f32.xlu0 %v314
        %v316 = vpop.xlane.xlu0 %315
        %v317 = vmul.f32 %v316, 0.00390625
        %vm318 = vcmask 64568
        %319 = vst.msk [vmem:[#allocation2] sm:$0xff] %vm318, %v317
        %v320 = vld [vmem:[#allocation2] sm:$0xff]
        %v321 = vld [vmem:[%s2] sm:$0xff]
        %vm322 = vcmask 64512
        %v324 = vsel %vm322, %v320, 0
        %326 = vmatpush.msra.mxu0 0.0
        %327 = vmatpush.msra.mxu0 0.0
        %328 = vmatpush.msra.mxu0 0.0
        %329 = vmatpush.msra.mxu0 0.0
        %330 = vmatpush.msra.mxu0 0.0
        %331 = vmatpush.msra.mxu0 0.0
        %332 = vmatpush.msra.mxu0 0.0
        %333 = vmatpush.msra.mxu0 0.0
        %334 = vmatpush.msra.mxu0 0.0
        %335 = vmatpush.msra.mxu0 0.0
        %336 = vmatpush.msra.mxu0 0.0
        %337 = vmatpush.msra.mxu0 0.0
        %338 = vmatpush.msra.mxu0 0.0
        %339 = vmatpush.msra.mxu0 0.0
        %340 = vmatpush.msra.mxu0 0.0
        %v341 = vand.u32 %v321, 4294901760
        %342 = vmatpush.msra.mxu0 %v341
        %v343 = vand.u32 %v324, 4294901760
        %v344 = vsub.f32 %v324, %v343
        %v345 = vand.u32 %v344, 4294901760
        %v346 = vsub.f32 %v344, %v345
        %v347 = vand.u32 %v346, 4294901760
        %348 = vmatmul.f32.gmra.mxu0 %v347
        %v349 = vpop.f32.mrf.mxu0
        %v350 = vadd.f32 0.0, %v349
        %351 = vdwg.mxu0
        %352 = vmatpush.msra.mxu0 0.0
        %353 = vmatpush.msra.mxu0 0.0
        %354 = vmatpush.msra.mxu0 0.0
        %355 = vmatpush.msra.mxu0 0.0
        %356 = vmatpush.msra.mxu0 0.0
        %357 = vmatpush.msra.mxu0 0.0
        %358 = vmatpush.msra.mxu0 0.0
        %359 = vmatpush.msra.mxu0 0.0
        %360 = vmatpush.msra.mxu0 0.0
        %361 = vmatpush.msra.mxu0 0.0
        %362 = vmatpush.msra.mxu0 0.0
        %363 = vmatpush.msra.mxu0 0.0
        %364 = vmatpush.msra.mxu0 0.0
        %365 = vmatpush.msra.mxu0 0.0
        %366 = vmatpush.msra.mxu0 0.0
        %v367 = vand.u32 %v321, 4294901760
        %v368 = vsub.f32 %v321, %v367
        %v369 = vand.u32 %v368, 4294901760
        %v370 = vsub.f32 %v368, %v369
        %v371 = vand.u32 %v370, 4294901760
        %372 = vmatpush.msra.mxu0 %v371
        %v373 = vand.u32 %v324, 4294901760
        %374 = vmatmul.f32.gmra.mxu0 %v373
        %v375 = vpop.f32.mrf.mxu0
        %v376 = vadd.f32 %v350, %v375
        %377 = vdwg.mxu0
        %378 = vmatpush.msra.mxu0 0.0
        %379 = vmatpush.msra.mxu0 0.0
        %380 = vmatpush.msra.mxu0 0.0
        %381 = vmatpush.msra.mxu0 0.0
        %382 = vmatpush.msra.mxu0 0.0
        %383 = vmatpush.msra.mxu0 0.0
        %384 = vmatpush.msra.mxu0 0.0
        %385 = vmatpush.msra.mxu0 0.0
        %386 = vmatpush.msra.mxu0 0.0
        %387 = vmatpush.msra.mxu0 0.0
        %388 = vmatpush.msra.mxu0 0.0
        %389 = vmatpush.msra.mxu0 0.0
        %390 = vmatpush.msra.mxu0 0.0
        %391 = vmatpush.msra.mxu0 0.0
        %392 = vmatpush.msra.mxu0 0.0
        %v393 = vand.u32 %v321, 4294901760
        %v394 = vsub.f32 %v321, %v393
        %395 = vmatpush.msra.mxu0 %v394
        %v396 = vand.u32 %v324, 4294901760
        %v397 = vsub.f32 %v324, %v396
        %398 = vmatmul.f32.gmra.mxu0 %v397
        %v399 = vpop.f32.mrf.mxu0
        %v400 = vadd.f32 %v376, %v399
        %401 = vdwg.mxu0
        %402 = vmatpush.msra.mxu0 0.0
        %403 = vmatpush.msra.mxu0 0.0
        %404 = vmatpush.msra.mxu0 0.0
        %405 = vmatpush.msra.mxu0 0.0
        %406 = vmatpush.msra.mxu0 0.0
        %407 = vmatpush.msra.mxu0 0.0
        %408 = vmatpush.msra.mxu0 0.0
        %409 = vmatpush.msra.mxu0 0.0
        %410 = vmatpush.msra.mxu0 0.0
        %411 = vmatpush.msra.mxu0 0.0
        %412 = vmatpush.msra.mxu0 0.0
        %413 = vmatpush.msra.mxu0 0.0
        %414 = vmatpush.msra.mxu0 0.0
        %415 = vmatpush.msra.mxu0 0.0
        %416 = vmatpush.msra.mxu0 0.0
        %v417 = vand.u32 %v321, 4294901760
        %418 = vmatpush.msra.mxu0 %v417
        %v419 = vand.u32 %v324, 4294901760
        %v420 = vsub.f32 %v324, %v419
        %v421 = vand.u32 %v420, 4294901760
        %422 = vmatmul.f32.gmra.mxu0 %v421
        %v423 = vpop.f32.mrf.mxu0
        %v424 = vadd.f32 %v400, %v423
        %425 = vdwg.mxu0
        %426 = vmatpush.msra.mxu0 0.0
        %427 = vmatpush.msra.mxu0 0.0
        %428 = vmatpush.msra.mxu0 0.0
        %429 = vmatpush.msra.mxu0 0.0
        %430 = vmatpush.msra.mxu0 0.0
        %431 = vmatpush.msra.mxu0 0.0
        %432 = vmatpush.msra.mxu0 0.0
        %433 = vmatpush.msra.mxu0 0.0
        %434 = vmatpush.msra.mxu0 0.0
        %435 = vmatpush.msra.mxu0 0.0
        %436 = vmatpush.msra.mxu0 0.0
        %437 = vmatpush.msra.mxu0 0.0
        %438 = vmatpush.msra.mxu0 0.0
        %439 = vmatpush.msra.mxu0 0.0
        %440 = vmatpush.msra.mxu0 0.0
        %v441 = vand.u32 %v321, 4294901760
        %v442 = vsub.f32 %v321, %v441
        %v443 = vand.u32 %v442, 4294901760
        %444 = vmatpush.msra.mxu0 %v443
        %v445 = vand.u32 %v324, 4294901760
        %446 = vmatmul.f32.gmra.mxu0 %v445
        %v447 = vpop.f32.mrf.mxu0
        %v448 = vadd.f32 %v424, %v447
        %449 = vdwg.mxu0
        %450 = vmatpush.msra.mxu0 0.0
        %451 = vmatpush.msra.mxu0 0.0
        %452 = vmatpush.msra.mxu0 0.0
        %453 = vmatpush.msra.mxu0 0.0
        %454 = vmatpush.msra.mxu0 0.0
        %455 = vmatpush.msra.mxu0 0.0
        %456 = vmatpush.msra.mxu0 0.0
        %457 = vmatpush.msra.mxu0 0.0
        %458 = vmatpush.msra.mxu0 0.0
        %459 = vmatpush.msra.mxu0 0.0
        %460 = vmatpush.msra.mxu0 0.0
        %461 = vmatpush.msra.mxu0 0.0
        %462 = vmatpush.msra.mxu0 0.0
        %463 = vmatpush.msra.mxu0 0.0
        %464 = vmatpush.msra.mxu0 0.0
        %v465 = vand.u32 %v321, 4294901760
        %466 = vmatpush.msra.mxu0 %v465
        %v467 = vand.u32 %v324, 4294901760
        %468 = vmatmul.f32.gmra.mxu0 %v467
        %v469 = vpop.f32.mrf.mxu0
        %v470 = vadd.f32 %v448, %v469
        %471 = vdwg.mxu0
        %v472 = vmax.f32 %v470, 0.0
        %v473 = vld [vmem:[%s3] sm:$0x3]
        %vm474 = vcmask 15360
        %v476 = vsel %vm474, %v472, 0
        %vm478 = vcmask 1041408
        %v480 = vsel %vm478, %v473, 0
        %482 = vmatpush.msra.mxu0 0.0
        %483 = vmatpush.msra.mxu0 0.0
        %484 = vmatpush.msra.mxu0 0.0
        %485 = vmatpush.msra.mxu0 0.0
        %486 = vmatpush.msra.mxu0 0.0
        %487 = vmatpush.msra.mxu0 0.0
        %488 = vmatpush.msra.mxu0 0.0
        %489 = vmatpush.msra.mxu0 0.0
        %490 = vmatpush.msra.mxu0 0.0
        %491 = vmatpush.msra.mxu0 0.0
        %492 = vmatpush.msra.mxu0 0.0
        %493 = vmatpush.msra.mxu0 0.0
        %494 = vmatpush.msra.mxu0 0.0
        %495 = vmatpush.msra.mxu0 0.0
        %496 = vmatpush.msra.mxu0 0.0
        %v497 = vand.u32 %v480, 4294901760
        %498 = vmatpush.msra.mxu0 %v497
        %v499 = vand.u32 %v476, 4294901760
        %v500 = vsub.f32 %v476, %v499
        %v501 = vand.u32 %v500, 4294901760
        %v502 = vsub.f32 %v500, %v501
        %v503 = vand.u32 %v502, 4294901760
        %504 = vmatmul.f32.gmra.mxu0 %v503
        %v505 = vpop.f32.mrf.mxu0
        %v506 = vadd.f32 0.0, %v505
        %507 = vdwg.mxu0
        %508 = vmatpush.msra.mxu0 0.0
        %509 = vmatpush.msra.mxu0 0.0
        %510 = vmatpush.msra.mxu0 0.0
        %511 = vmatpush.msra.mxu0 0.0
        %512 = vmatpush.msra.mxu0 0.0
        %513 = vmatpush.msra.mxu0 0.0
        %514 = vmatpush.msra.mxu0 0.0
        %515 = vmatpush.msra.mxu0 0.0
        %516 = vmatpush.msra.mxu0 0.0
        %517 = vmatpush.msra.mxu0 0.0
        %518 = vmatpush.msra.mxu0 0.0
        %519 = vmatpush.msra.mxu0 0.0
        %520 = vmatpush.msra.mxu0 0.0
        %521 = vmatpush.msra.mxu0 0.0
        %522 = vmatpush.msra.mxu0 0.0
        %v523 = vand.u32 %v480, 4294901760
        %v524 = vsub.f32 %v480, %v523
        %v525 = vand.u32 %v524, 4294901760
        %v526 = vsub.f32 %v524, %v525
        %v527 = vand.u32 %v526, 4294901760
        %528 = vmatpush.msra.mxu0 %v527
        %v529 = vand.u32 %v476, 4294901760
        %530 = vmatmul.f32.gmra.mxu0 %v529
        %v531 = vpop.f32.mrf.mxu0
        %v532 = vadd.f32 %v506, %v531
        %533 = vdwg.mxu0
        %534 = vmatpush.msra.mxu0 0.0
        %535 = vmatpush.msra.mxu0 0.0
        %536 = vmatpush.msra.mxu0 0.0
        %537 = vmatpush.msra.mxu0 0.0
        %538 = vmatpush.msra.mxu0 0.0
        %539 = vmatpush.msra.mxu0 0.0
        %540 = vmatpush.msra.mxu0 0.0
        %541 = vmatpush.msra.mxu0 0.0
        %542 = vmatpush.msra.mxu0 0.0
        %543 = vmatpush.msra.mxu0 0.0
        %544 = vmatpush.msra.mxu0 0.0
        %545 = vmatpush.msra.mxu0 0.0
        %546 = vmatpush.msra.mxu0 0.0
        %547 = vmatpush.msra.mxu0 0.0
        %548 = vmatpush.msra.mxu0 0.0
        %v549 = vand.u32 %v480, 4294901760
        %v550 = vsub.f32 %v480, %v549
        %551 = vmatpush.msra.mxu0 %v550
        %v552 = vand.u32 %v476, 4294901760
        %v553 = vsub.f32 %v476, %v552
        %554 = vmatmul.f32.gmra.mxu0 %v553
        %v555 = vpop.f32.mrf.mxu0
        %v556 = vadd.f32 %v532, %v555
        %557 = vdwg.mxu0
        %558 = vmatpush.msra.mxu0 0.0
        %559 = vmatpush.msra.mxu0 0.0
        %560 = vmatpush.msra.mxu0 0.0
        %561 = vmatpush.msra.mxu0 0.0
        %562 = vmatpush.msra.mxu0 0.0
        %563 = vmatpush.msra.mxu0 0.0
        %564 = vmatpush.msra.mxu0 0.0
        %565 = vmatpush.msra.mxu0 0.0
        %566 = vmatpush.msra.mxu0 0.0
        %567 = vmatpush.msra.mxu0 0.0
        %568 = vmatpush.msra.mxu0 0.0
        %569 = vmatpush.msra.mxu0 0.0
        %570 = vmatpush.msra.mxu0 0.0
        %571 = vmatpush.msra.mxu0 0.0
        %572 = vmatpush.msra.mxu0 0.0
        %v573 = vand.u32 %v480, 4294901760
        %574 = vmatpush.msra.mxu0 %v573
        %v575 = vand.u32 %v476, 4294901760
        %v576 = vsub.f32 %v476, %v575
        %v577 = vand.u32 %v576, 4294901760
        %578 = vmatmul.f32.gmra.mxu0 %v577
        %v579 = vpop.f32.mrf.mxu0
        %v580 = vadd.f32 %v556, %v579
        %581 = vdwg.mxu0
        %582 = vmatpush.msra.mxu0 0.0
        %583 = vmatpush.msra.mxu0 0.0
        %584 = vmatpush.msra.mxu0 0.0
        %585 = vmatpush.msra.mxu0 0.0
        %586 = vmatpush.msra.mxu0 0.0
        %587 = vmatpush.msra.mxu0 0.0
        %588 = vmatpush.msra.mxu0 0.0
        %589 = vmatpush.msra.mxu0 0.0
        %590 = vmatpush.msra.mxu0 0.0
        %591 = vmatpush.msra.mxu0 0.0
        %592 = vmatpush.msra.mxu0 0.0
        %593 = vmatpush.msra.mxu0 0.0
        %594 = vmatpush.msra.mxu0 0.0
        %595 = vmatpush.msra.mxu0 0.0
        %596 = vmatpush.msra.mxu0 0.0
        %v597 = vand.u32 %v480, 4294901760
        %v598 = vsub.f32 %v480, %v597
        %v599 = vand.u32 %v598, 4294901760
        %600 = vmatpush.msra.mxu0 %v599
        %v601 = vand.u32 %v476, 4294901760
        %602 = vmatmul.f32.gmra.mxu0 %v601
        %v603 = vpop.f32.mrf.mxu0
        %v604 = vadd.f32 %v580, %v603
        %605 = vdwg.mxu0
        %606 = vmatpush.msra.mxu0 0.0
        %607 = vmatpush.msra.mxu0 0.0
        %608 = vmatpush.msra.mxu0 0.0
        %609 = vmatpush.msra.mxu0 0.0
        %610 = vmatpush.msra.mxu0 0.0
        %611 = vmatpush.msra.mxu0 0.0
        %612 = vmatpush.msra.mxu0 0.0
        %613 = vmatpush.msra.mxu0 0.0
        %614 = vmatpush.msra.mxu0 0.0
        %615 = vmatpush.msra.mxu0 0.0
        %616 = vmatpush.msra.mxu0 0.0
        %617 = vmatpush.msra.mxu0 0.0
        %618 = vmatpush.msra.mxu0 0.0
        %619 = vmatpush.msra.mxu0 0.0
        %620 = vmatpush.msra.mxu0 0.0
        %v621 = vand.u32 %v480, 4294901760
        %622 = vmatpush.msra.mxu0 %v621
        %v623 = vand.u32 %v476, 4294901760
        %624 = vmatmul.f32.gmra.mxu0 %v623
        %v625 = vpop.f32.mrf.mxu0
        %v626 = vadd.f32 %v604, %v625
        %627 = vdwg.mxu0
        %v628 = vxor.u32 %v626, 2147483648
        %v629 = vmul.f32 %v628, 1.442695
        %v630 = vpow.pop %v629
        %v631 = vadd.f32 %v630, 1.0
        %v632 = vrcp.pop %v631
        %v633 = vmul.f32 %v631, %v632
        %v634 = vsub.f32 1.0, %v633
        %v635 = vmul.f32 %v632, %v634
        %v636 = vadd.f32 %v632, %v635
        %vm637 = vweird.f32 %v631
        %vm638 = vweird.f32 %v632
        %vm639 = vmor %vm637, %vm638
        %v640 = vsel %vm639, %v632, %v636
        %v641 = vand.u32 2147483647, %v631
        %vm642 = vcmp.eq.f32.partialorder %v641, 8.507059e+37
        %v643 = vand.u32 %v631, 2147483648
        %v644 = vor.u32 1.1754944e-38, %v643
        %v645 = vsel %vm642, %v644, %v640
        %v646 = vmul.f32 1.0, %v645
        %v647 = vld [vmem:[%s215] sm:$0xff]
        %v648 = vld [vmem:[%s215 + $0x8] sm:$0xff]
        %650 = vset.pattern.permute.xlu0 0
        %651 = vperm.xlu0 %650, %v646
        %v652 = vpop.permute.xlu0 %651
        %v654 = vmul.f32 %v647, %v652
        %v655 = vmul.f32 %v648, %v652
        %v656 = vld [vmem:[%s225] sm:$0xff]
        %v657 = vld [vmem:[%s225 + $0x8] sm:$0xff]
        %658 = vset.pattern.permute.xlu0 4
        %659 = vperm.xlu0 %658, %v646
        %v660 = vpop.permute.xlu0 %659
        %v662 = vmul.f32 %v656, %v660
        %v663 = vmul.f32 %v657, %v660
        %v664 = vadd.f32 %v654, %v662
        %v665 = vadd.f32 %v655, %v663
        %666 = vst [vmem:[%s255] sm:$0xff] %v664
        %667 = vst [vmem:[%s255 + $0x8] sm:$0xff] %v665
        %v668 = vld [vmem:[%s215 + $0x10] sm:$0xff]
        %v669 = vld [vmem:[%s215 + $0x18] sm:$0xff]
        %670 = vset.pattern.permute.xlu0 1
        %671 = vperm.xlu0 %670, %v646
        %v672 = vpop.permute.xlu0 %671
        %v674 = vmul.f32 %v668, %v672
        %v675 = vmul.f32 %v669, %v672
        %v676 = vld [vmem:[%s225 + $0x10] sm:$0xff]
        %v677 = vld [vmem:[%s225 + $0x18] sm:$0xff]
        %678 = vset.pattern.permute.xlu0 5
        %679 = vperm.xlu0 %678, %v646
        %v680 = vpop.permute.xlu0 %679
        %v682 = vmul.f32 %v676, %v680
        %v683 = vmul.f32 %v677, %v680
        %v684 = vadd.f32 %v674, %v682
        %v685 = vadd.f32 %v675, %v683
        %686 = vst [vmem:[%s255 + $0x10] sm:$0xff] %v684
        %687 = vst [vmem:[%s255 + $0x18] sm:$0xff] %v685
        %v688 = vld [vmem:[%s215 + $0x20] sm:$0xff]
        %v689 = vld [vmem:[%s215 + $0x28] sm:$0xff]
        %690 = vset.pattern.permute.xlu0 2
        %691 = vperm.xlu0 %690, %v646
        %v692 = vpop.permute.xlu0 %691
        %v694 = vmul.f32 %v688, %v692
        %v695 = vmul.f32 %v689, %v692
        %v696 = vld [vmem:[%s225 + $0x20] sm:$0xff]
        %v697 = vld [vmem:[%s225 + $0x28] sm:$0xff]
        %698 = vset.pattern.permute.xlu0 6
        %699 = vperm.xlu0 %698, %v646
        %v700 = vpop.permute.xlu0 %699
        %v702 = vmul.f32 %v696, %v700
        %v703 = vmul.f32 %v697, %v700
        %v704 = vadd.f32 %v694, %v702
        %v705 = vadd.f32 %v695, %v703
        %706 = vst [vmem:[%s255 + $0x20] sm:$0xff] %v704
        %707 = vst [vmem:[%s255 + $0x28] sm:$0xff] %v705
        %v708 = vld [vmem:[%s215 + $0x30] sm:$0xff]
        %v709 = vld [vmem:[%s215 + $0x38] sm:$0xff]
        %710 = vset.pattern.permute.xlu0 3
        %711 = vperm.xlu0 %710, %v646
        %v712 = vpop.permute.xlu0 %711
        %v714 = vmul.f32 %v708, %v712
        %v715 = vmul.f32 %v709, %v712
        %v716 = vld [vmem:[%s225 + $0x30] sm:$0xff]
        %v717 = vld [vmem:[%s225 + $0x38] sm:$0xff]
        %718 = vset.pattern.permute.xlu0 7
        %719 = vperm.xlu0 %718, %v646
        %v720 = vpop.permute.xlu0 %719
        %v722 = vmul.f32 %v716, %v720
        %v723 = vmul.f32 %v717, %v720
        %v724 = vadd.f32 %v714, %v722
        %v725 = vadd.f32 %v715, %v723
        %726 = vst [vmem:[%s255 + $0x30] sm:$0xff] %v724
        %727 = vst [vmem:[%s255 + $0x38] sm:$0xff] %v725
        %s728 = sand.u32 %s126, 1
        %s729 = scalar_lea.sflag [#allocation5], %s728
        %s730 = sand.u32 %s126, 1
        %s731 = smul.addr %s730, 64
        %s732 = scalar_lea.vmem [#allocation8], %s731
        // Predicated region
        $region45: #{tpu_custom_call.1} parent=35 // pred_check
          %p733 = pneg %p136
        $region46: #{tpu_custom_call.1} parent=35 // pred_check_branch
          %735 = sbr.rel (%p733) target = $region48
        $region47: #{tpu_custom_call.1} parent=35 // pred_region
          %737 = vsyncadd %s729, 0
          %s738 = smul.addr %s24, 8
          %s739 = smul.addr %s738, 8
          %s740 = scalar_lea.hbm %s4, %s739
          %s742 = sshll.u32 %s732, 4
          %s743 = int_to_ptr.vmem [resolvable:$true] %s742
          %s744 = sshll.u32 %s740, 4
          %s745 = int_to_ptr.hbm [resolvable:$true] %s744
          %747 = dma.vmem_to_hbm [thread:$0]  %s743, 1024, %s745, %s729
        $region48: #{tpu_custom_call.1} parent=35 // pred_fallthru
          _
      $region36: #{tpu_custom_call.1} parent=5 // pred_fallthru
        _
      %p748 = scmp.le.s32.totalorder 2, %s19
      // Predicated region
      $region49: #{tpu_custom_call.1} parent=5 // pred_check
        %p749 = pneg %p748
      $region50: #{tpu_custom_call.1} parent=5 // pred_check_branch
        %751 = sbr.rel (%p749) target = $region52
      $region51: #{tpu_custom_call.1} parent=5 // pred_region
        %s752 = ssub.s32 %s19, 2
        // Predicated region
        $region53: #{tpu_custom_call.1} parent=51 // pred_check
          %p753 = pneg %p142
        $region54: #{tpu_custom_call.1} parent=51 // pred_check_branch
          %755 = sbr.rel (%p753) target = $region56
        $region55: #{tpu_custom_call.1} parent=51 // pred_region
          %s756 = sand.u32 %s127, 1
          %s757 = scalar_lea.sflag [#allocation5], %s756
          %s758 = sand.u32 %s127, 1
          %s759 = smul.addr %s758, 64
          %s760 = scalar_lea.vmem [#allocation8], %s759
          %762 = dma.done %s757, 1024
        $region56: #{tpu_custom_call.1} parent=51 // pred_fallthru
          _
      $region52: #{tpu_custom_call.1} parent=5 // pred_fallthru
        _
    $region6: #{tpu_custom_call.1} parent=1 // loop_footer
      %s23 = sadd.s32 1, %s19
    $region7: #{tpu_custom_call.1} parent=1 // loop_footer_branch
      %18 = sbr.rel target = $region3
    $region8: #{tpu_custom_call.1} parent=1 // loop_exit
      _
    %763 = vsyncpa [#allocation4], 1
    %s764 = scalar_lea.sflag [#allocation4], 1
    %765 = vsyncpa %s764, 1
    %766 = vsyncpa [#allocation7], 1
    %s767 = scalar_lea.sflag [#allocation7], 1
    %768 = vsyncpa %s767, 1
    %769 = vsyncpa [#allocation5], 1
    %s770 = scalar_lea.sflag [#allocation5], 1
    %771 = vsyncpa %s770, 1

</llo_original>
